<compile_context>
chip_gen: v7x
topology: tpu7x:2x2x1
jax: 0.10.0
libtpu: 0.0.40
codegen_flags: <defaults>
</compile_context>

<pallas_src>
import math

import jax
import jax.numpy as jnp
from jax import lax
from jax.experimental import pallas as pl
from jax.experimental.pallas import tpu as pltpu

_EPS = 1e-8          # torch.nn.CosineSimilarity default eps
_CLAMP = 0.99999
_TB_MAX = 4096       # max batch tile (lanes); 2 in x 2 buf x 3 x 4096 x 4B ~ 196 KiB VMEM

# Abramowitz & Stegun 4.4.46: acos(x) ~= sqrt(1-x) * poly(x), 0 <= x <= 1,
# |error| <= 2e-8 rad.  Coefficients in Horner order (highest degree first).
_ACOS_COEFFS = (
    -0.0012624911,
     0.0066700901,
    -0.0170881256,
     0.0308918810,
    -0.0501743046,
     0.0889789874,
    -0.2145988016,
     1.5707963050,
)


def _acos_poly(x):
    """acos for x in [-1, 1] (clamped) via A&S 4.4.46.  EUP sqrt + VPU Horner."""
    ax = jnp.abs(x)
    p = jnp.float32(_ACOS_COEFFS[0])
    for c in _ACOS_COEFFS[1:]:
        p = p * ax + jnp.float32(c)
    acos_abs = jnp.sqrt(1.0 - ax) * p
    return jnp.where(x >= 0.0, acos_abs, jnp.float32(math.pi) - acos_abs)


def _round_up(x, m):
    return ((x + m - 1) // m) * m


def angular_loss(illum_gt, illum_pred):
    """Mean angular error in degrees between (B, C) illuminant vectors."""
    assert illum_gt.shape == illum_pred.shape and illum_gt.ndim == 2
    B, C = illum_gt.shape

    # Layout plumbing in the wrapper: put B on the lane axis, pad to a tile
    # multiple of 128 lanes.  Zero-padded columns are masked out in-kernel.
    tb = min(_TB_MAX, _round_up(B, 128))
    b_pad = _round_up(B, tb)
    gt_t = jnp.transpose(illum_gt)        # (C, B)
    pr_t = jnp.transpose(illum_pred)
    if b_pad != B:
        pad = ((0, 0), (0, b_pad - B))
        gt_t = jnp.pad(gt_t, pad)
        pr_t = jnp.pad(pr_t, pad)
    grid = (b_pad // tb,)
    scale = 180.0 / math.pi / B

    def kernel(gt_ref, pred_ref, out_ref):
        i = pl.program_id(0)

        @pl.when(i == 0)
        def _init():
            out_ref[...] = jnp.zeros_like(out_ref)

        g = gt_ref[...].astype(jnp.float32)     # (C, tb)  f32 math (v5e-safe)
        p = pred_ref[...].astype(jnp.float32)

        gp = g * p
        gg = g * g
        pp = p * p
        # Explicit row adds over the tiny C axis (pure VPU, no XLU reduce).
        dot = gp[0:1, :]
        n1sq = gg[0:1, :]
        n2sq = pp[0:1, :]
        for r in range(1, C):
            dot = dot + gp[r:r + 1, :]
            n1sq = n1sq + gg[r:r + 1, :]
            n2sq = n2sq + pp[r:r + 1, :]

        # cos = dot / max(||a||*||b||, eps)  ==  dot * rsqrt(max(||a||^2*||b||^2, eps^2))
        denom_sq = jnp.maximum(n1sq * n2sq, jnp.float32(_EPS * _EPS))
        cos = dot * lax.rsqrt(denom_sq)
        cos = jnp.clip(cos, -_CLAMP, _CLAMP)

        angle = _acos_poly(cos)                               # (1, tb), radians

        # Mask out the zero-padded batch columns, then accumulate the sum.
        col = i * tb + lax.broadcasted_iota(jnp.int32, (1, tb), 1)
        angle = jnp.where(col < B, angle, 0.0)
        out_ref[...] += jnp.sum(angle, axis=1, keepdims=True)

        @pl.when(i == pl.num_programs(0) - 1)
        def _finalize():
            out_ref[...] = out_ref[...] * jnp.float32(scale)

    out = pl.pallas_call(
        kernel,
        out_shape=jax.ShapeDtypeStruct((1, 1), jnp.float32),
        grid=grid,
        in_specs=[
            pl.BlockSpec((C, tb), lambda i: (0, i)),
            pl.BlockSpec((C, tb), lambda i: (0, i)),
        ],
        # Resident accumulator: same block for every grid step -> the B axis is
        # a reduction, hence "arbitrary" (serial) semantics.
        out_specs=pl.BlockSpec((1, 1), lambda i: (0, 0)),
        compiler_params=pltpu.CompilerParams(
            dimension_semantics=("arbitrary",)),
    )(gt_t, pr_t)

    return out[0, 0]


def _reference_loss(illum_gt, illum_pred):
    """Pure-JAX reference mirroring torch.nn.CosineSimilarity semantics."""
    dot = jnp.sum(illum_gt * illum_pred, axis=1)
    n1 = jnp.linalg.norm(illum_gt, axis=1)
    n2 = jnp.linalg.norm(illum_pred, axis=1)
    cos = dot / jnp.maximum(n1 * n2, _EPS)
    cos = jnp.clip(cos, -_CLAMP, _CLAMP)
    return jnp.mean(jnp.arccos(cos)) * (180.0 / math.pi)


if __name__ == "__main__":
    key = jax.random.PRNGKey(0)
    k1, k2 = jax.random.split(key)

    B, C = 8, 3  # batch of 8 RGB illuminant vectors
    illum_gt = jax.random.uniform(k1, (B, C), dtype=jnp.float32,
                                  minval=0.05, maxval=1.0)
    illum_pred = jax.random.uniform(k2, (B, C), dtype=jnp.float32,
                                    minval=0.05, maxval=1.0)

    loss = angular_loss(illum_gt, illum_pred)
    loss = jax.block_until_ready(loss)

    ref = _reference_loss(illum_gt, illum_pred)
    # f32 EUP rsqrt + polynomial acos compose to ~1e-4-degree agreement with
    # the exact-arccos reference; tolerate that.
    assert jnp.allclose(loss, ref, rtol=1e-4, atol=1e-4), (loss, ref)

    print("KERNEL_OK")
</pallas_src>

<mosaic_0001>
module attributes {stable_mosaic.version = 11 : i64} {
  func.func @kernel(%arg0: i32, %arg1: memref<3x128xf32, #tpu.memory_space<vmem>>, %arg2: memref<3x128xf32, #tpu.memory_space<vmem>>, %arg3: memref<1x1xf32, #tpu.memory_space<vmem>>) attributes {dimension_semantics = [#tpu.dimension_semantics<arbitrary>], iteration_bounds = array<i64: 1>, scalar_prefetch = 0 : i64, scratch_operands = 0 : i64, tpu.core_type = #tpu.core_type<tc>, window_params = [{transform_indices = @transform_0, window_bounds = array<i64: 3, 128>}, {transform_indices = @transform_1, window_bounds = array<i64: 3, 128>}, {pipeline_mode = #tpu.pipeline_mode<synchronous>, transform_indices = @transform_2, window_bounds = array<i64: 1, 1>}]} {
    %c0_i32 = arith.constant 0 : i32
    %0 = arith.cmpi eq, %arg0, %c0_i32 : i32
    %1 = arith.extui %0 : i1 to i32
    %c0_i32_0 = arith.constant 0 : i32
    %2 = arith.cmpi ne, %1, %c0_i32_0 : i32
    scf.if %2 {
      %cst_25 = arith.constant 0.000000e+00 : f32
      %80 = vector.broadcast %cst_25 : f32 to vector<1x1xf32>
      %c0_26 = arith.constant 0 : index
      %c0_27 = arith.constant 0 : index
      %81 = vector.load %arg3[%c0_26, %c0_27] : memref<1x1xf32, #tpu.memory_space<vmem>>, vector<1x1xf32>
      tpu.vector_store %arg3[%c0_26, %c0_27], %80 {strides = array<i32>} : memref<1x1xf32, #tpu.memory_space<vmem>>, vector<1x1xf32>,
    } else {
    }
    %c0 = arith.constant 0 : index
    %c0_1 = arith.constant 0 : index
    %3 = vector.load %arg1[%c0, %c0_1] : memref<3x128xf32, #tpu.memory_space<vmem>>, vector<3x128xf32>
    %c0_2 = arith.constant 0 : index
    %c0_3 = arith.constant 0 : index
    %4 = vector.load %arg2[%c0_2, %c0_3] : memref<3x128xf32, #tpu.memory_space<vmem>>, vector<3x128xf32>
    %5 = arith.mulf %3, %4 : vector<3x128xf32>
    %6 = arith.mulf %3, %3 : vector<3x128xf32>
    %7 = arith.mulf %4, %4 : vector<3x128xf32>
    %8 = vector.extract_strided_slice %5 {offsets = [0, 0], sizes = [1, 128], strides = [1, 1]} : vector<3x128xf32> to vector<1x128xf32>
    %9 = vector.extract_strided_slice %6 {offsets = [0, 0], sizes = [1, 128], strides = [1, 1]} : vector<3x128xf32> to vector<1x128xf32>
    %10 = vector.extract_strided_slice %7 {offsets = [0, 0], sizes = [1, 128], strides = [1, 1]} : vector<3x128xf32> to vector<1x128xf32>
    %11 = vector.extract_strided_slice %5 {offsets = [1, 0], sizes = [1, 128], strides = [1, 1]} : vector<3x128xf32> to vector<1x128xf32>
    %12 = arith.addf %8, %11 : vector<1x128xf32>
    %13 = vector.extract_strided_slice %6 {offsets = [1, 0], sizes = [1, 128], strides = [1, 1]} : vector<3x128xf32> to vector<1x128xf32>
    %14 = arith.addf %9, %13 : vector<1x128xf32>
    %15 = vector.extract_strided_slice %7 {offsets = [1, 0], sizes = [1, 128], strides = [1, 1]} : vector<3x128xf32> to vector<1x128xf32>
    %16 = arith.addf %10, %15 : vector<1x128xf32>
    %17 = vector.extract_strided_slice %5 {offsets = [2, 0], sizes = [1, 128], strides = [1, 1]} : vector<3x128xf32> to vector<1x128xf32>
    %18 = arith.addf %12, %17 : vector<1x128xf32>
    %19 = vector.extract_strided_slice %6 {offsets = [2, 0], sizes = [1, 128], strides = [1, 1]} : vector<3x128xf32> to vector<1x128xf32>
    %20 = arith.addf %14, %19 : vector<1x128xf32>
    %21 = vector.extract_strided_slice %7 {offsets = [2, 0], sizes = [1, 128], strides = [1, 1]} : vector<3x128xf32> to vector<1x128xf32>
    %22 = arith.addf %16, %21 : vector<1x128xf32>
    %23 = arith.mulf %20, %22 : vector<1x128xf32>
    %cst = arith.constant 1.000000e-16 : f32
    %24 = vector.broadcast %cst : f32 to vector<1x128xf32>
    %25 = arith.maximumf %23, %24 : vector<1x128xf32>
    %26 = math.rsqrt %25 : vector<1x128xf32>
    %27 = arith.mulf %18, %26 : vector<1x128xf32>
    %cst_4 = arith.constant -0.999989986 : f32
    %cst_5 = arith.constant 0.999989986 : f32
    %28 = vector.broadcast %cst_4 : f32 to vector<1x128xf32>
    %29 = arith.maximumf %28, %27 : vector<1x128xf32>
    %30 = vector.broadcast %cst_5 : f32 to vector<1x128xf32>
    %31 = arith.minimumf %30, %29 : vector<1x128xf32>
    %32 = math.absf %31 : vector<1x128xf32>
    %cst_6 = arith.constant -0.0012624911 : f32
    %33 = vector.broadcast %cst_6 : f32 to vector<1x128xf32>
    %34 = arith.mulf %33, %32 : vector<1x128xf32>
    %cst_7 = arith.constant 6.670090e-03 : f32
    %35 = vector.broadcast %cst_7 : f32 to vector<1x128xf32>
    %36 = arith.addf %34, %35 : vector<1x128xf32>
    %37 = arith.mulf %36, %32 : vector<1x128xf32>
    %cst_8 = arith.constant -0.0170881264 : f32
    %38 = vector.broadcast %cst_8 : f32 to vector<1x128xf32>
    %39 = arith.addf %37, %38 : vector<1x128xf32>
    %40 = arith.mulf %39, %32 : vector<1x128xf32>
    %cst_9 = arith.constant 0.0308918804 : f32
    %41 = vector.broadcast %cst_9 : f32 to vector<1x128xf32>
    %42 = arith.addf %40, %41 : vector<1x128xf32>
    %43 = arith.mulf %42, %32 : vector<1x128xf32>
    %cst_10 = arith.constant -0.0501743034 : f32
    %44 = vector.broadcast %cst_10 : f32 to vector<1x128xf32>
    %45 = arith.addf %43, %44 : vector<1x128xf32>
    %46 = arith.mulf %45, %32 : vector<1x128xf32>
    %cst_11 = arith.constant 0.0889789909 : f32
    %47 = vector.broadcast %cst_11 : f32 to vector<1x128xf32>
    %48 = arith.addf %46, %47 : vector<1x128xf32>
    %49 = arith.mulf %48, %32 : vector<1x128xf32>
    %cst_12 = arith.constant -0.214598805 : f32
    %50 = vector.broadcast %cst_12 : f32 to vector<1x128xf32>
    %51 = arith.addf %49, %50 : vector<1x128xf32>
    %52 = arith.mulf %51, %32 : vector<1x128xf32>
    %cst_13 = arith.constant 1.57079625 : f32
    %53 = vector.broadcast %cst_13 : f32 to vector<1x128xf32>
    %54 = arith.addf %52, %53 : vector<1x128xf32>
    %cst_14 = arith.constant 1.000000e+00 : f32
    %55 = vector.broadcast %cst_14 : f32 to vector<1x128xf32>
    %56 = arith.subf %55, %32 : vector<1x128xf32>
    %57 = math.sqrt %56 : vector<1x128xf32>
    %58 = arith.mulf %57, %54 : vector<1x128xf32>
    %cst_15 = arith.constant 0.000000e+00 : f32
    %59 = vector.broadcast %cst_15 : f32 to vector<1x128xf32>
    %60 = arith.cmpf oge, %31, %59 : vector<1x128xf32>
    %cst_16 = arith.constant 3.14159274 : f32
    %61 = vector.broadcast %cst_16 : f32 to vector<1x128xf32>
    %62 = arith.subf %61, %58 : vector<1x128xf32>
    %63 = arith.select %60, %58, %62 : vector<1x128xi1>, vector<1x128xf32>
    %c128_i32 = arith.constant 128 : i32
    %64 = arith.muli %arg0, %c128_i32 : i32
    %65 = tpu.iota {dimensions = array<i32: 1>} : vector<1x128xi32>
    %66 = vector.broadcast %64 : i32 to vector<1x128xi32>
    %67 = arith.addi %66, %65 : vector<1x128xi32>
    %c8_i32 = arith.constant 8 : i32
    %68 = vector.broadcast %c8_i32 : i32 to vector<1x128xi32>
    %69 = arith.cmpi slt, %67, %68 : vector<1x128xi32>
    %cst_17 = arith.constant 0.000000e+00 : f32
    %70 = vector.broadcast %cst_17 : f32 to vector<1x128xf32>
    %71 = arith.select %69, %63, %70 : vector<1x128xi1>, vector<1x128xf32>
    %c0_18 = arith.constant 0 : index
    %c0_19 = arith.constant 0 : index
    %72 = vector.load %arg3[%c0_18, %c0_19] : memref<1x1xf32, #tpu.memory_space<vmem>>, vector<1x1xf32>
    %cst_20 = arith.constant dense<0.000000e+00> : vector<1xf32>
    %73 = vector.multi_reduction <add>, %71, %cst_20 [1] : vector<1x128xf32> to vector<1xf32>
    %74 = vector.shape_cast %73 : vector<1xf32> to vector<1x1xf32>
    %75 = arith.addf %72, %74 : vector<1x1xf32>
    %c0_21 = arith.constant 0 : index
    %c0_22 = arith.constant 0 : index
    %76 = vector.load %arg3[%c0_21, %c0_22] : memref<1x1xf32, #tpu.memory_space<vmem>>, vector<1x1xf32>
    tpu.vector_store %arg3[%c0_21, %c0_22], %75 {strides = array<i32>} : memref<1x1xf32, #tpu.memory_space<vmem>>, vector<1x1xf32>,
    %c0_i32_23 = arith.constant 0 : i32
    %77 = arith.cmpi eq, %arg0, %c0_i32_23 : i32
    %78 = arith.extui %77 : i1 to i32
    %c0_i32_24 = arith.constant 0 : i32
    %79 = arith.cmpi ne, %78, %c0_i32_24 : i32
    scf.if %79 {
      %c0_25 = arith.constant 0 : index
      %c0_26 = arith.constant 0 : index
      %80 = vector.load %arg3[%c0_25, %c0_26] : memref<1x1xf32, #tpu.memory_space<vmem>>, vector<1x1xf32>
      %cst_27 = arith.constant 7.16197252 : f32
      %81 = vector.broadcast %cst_27 : f32 to vector<1x1xf32>
      %82 = arith.mulf %80, %81 : vector<1x1xf32>
      %c0_28 = arith.constant 0 : index
      %c0_29 = arith.constant 0 : index
      %83 = vector.load %arg3[%c0_28, %c0_29] : memref<1x1xf32, #tpu.memory_space<vmem>>, vector<1x1xf32>
      tpu.vector_store %arg3[%c0_28, %c0_29], %82 {strides = array<i32>} : memref<1x1xf32, #tpu.memory_space<vmem>>, vector<1x1xf32>,
    } else {
    }
    return
  }
  func.func @transform_0(%arg0: i32) -> (i32, i32) {
    %c0_i32 = arith.constant 0 : i32
    %c0_i32_0 = arith.constant 0 : i32
    return %c0_i32, %arg0 : i32, i32
  }
  func.func @transform_1(%arg0: i32) -> (i32, i32) {
    %c0_i32 = arith.constant 0 : i32
    %c0_i32_0 = arith.constant 0 : i32
    return %c0_i32, %arg0 : i32, i32
  }
  func.func @transform_2(%arg0: i32) -> (i32, i32) {
    %c0_i32 = arith.constant 0 : i32
    %c0_i32_0 = arith.constant 0 : i32
    %c0_i32_1 = arith.constant 0 : i32
    return %c0_i32, %c0_i32_0 : i32, i32
  }
}

</mosaic_0001>

<llo_original>
// kernel: tpu_custom_call.1
$region0: #{tpu_custom_call.1}
  #allocation0 [shape = 'u32[]', space=smem, size = 0x4, offset = 0x4, fixed_abs, tag = 'smem constant byte address 0x4 - core index']
  #allocation1 [shape = 'u32[144,128]{1,0:T(1,128)}', space=vmem, size = 0x12000, scoped, tag = 'internal scratch']
  %s0 = inlined_call_operand.hbm [shape: f32[3,128], index: 0, kind: input, shape index: {}]
  %s1 = inlined_call_operand.hbm [shape: f32[3,128], index: 1, kind: input, shape index: {}]
  %s2 = inlined_call_operand.hbm [shape: f32[1,1], index: 2, kind: output, shape index: {}]
  %s3 = sld [smem:[#allocation0]]
  $region34: #{tpu_custom_call.1} parent=0
    _
  %s5 = ssub.s32 1, %s3
  %s6 = scalar_select 0, %s5, %s3
  $region1: #{tpu_custom_call.1} parent=0
    #allocation2 [shape = 'u8[2048]{0}', space=vmem, size = 0x800, scoped, tag = 'input window, operand 0, single buffered']
    #allocation3 [shape = 's32[1]{0}', space=sflag, size = 0x4, scoped, tag = 'scoped memory for tpu_custom_call.1']
    #allocation4 [shape = 's32[1]{0}', space=sflag, size = 0x4, scoped, tag = 'scoped memory for tpu_custom_call.1']
    #allocation5 [shape = 'u8[2048]{0}', space=vmem, size = 0x800, scoped, tag = 'input window, operand 1, single buffered']
    #allocation6 [shape = 's32[1]{0}', space=sflag, size = 0x4, scoped, tag = 'scoped memory for tpu_custom_call.1']
    #allocation7 [shape = 'u8[512]{0}', space=vmem, size = 0x400, scoped, tag = 'output window, operand 0, single buffered']
    %7 = vsyncpa [#allocation3], 0
    %8 = vsyncpa [#allocation6], 0
    %9 = vsyncpa [#allocation4], 0
    // Predicated region
    $region2: #{tpu_custom_call.1} parent=1 // pred_check
      _
    $region3: #{tpu_custom_call.1} parent=1 // pred_check_branch
      %11 = sbr.rel (0) target = $region5
    $region4: #{tpu_custom_call.1} parent=1 // pred_region
      %s13 = ssub.s32 64, 64
      %14 = vsyncadd [#allocation3], %s13
      %s16 = sshll.u32 [#allocation2], 4
      %s17 = int_to_ptr.vmem [resolvable:$true] %s16
      %19 = dma.hbm_to_vmem [thread:$0]  %s0, 64, %s17, [#allocation3]
    $region5: #{tpu_custom_call.1} parent=1 // pred_fallthru
      _
    // Predicated region
    $region6: #{tpu_custom_call.1} parent=1 // pred_check
      _
    $region7: #{tpu_custom_call.1} parent=1 // pred_check_branch
      %21 = sbr.rel (0) target = $region9
    $region8: #{tpu_custom_call.1} parent=1 // pred_region
      %s23 = ssub.s32 64, 64
      %24 = vsyncadd [#allocation6], %s23
      %s26 = sshll.u32 [#allocation5], 4
      %s27 = int_to_ptr.vmem [resolvable:$true] %s26
      %29 = dma.hbm_to_vmem [thread:$0]  %s1, 64, %s27, [#allocation6]
    $region9: #{tpu_custom_call.1} parent=1 // pred_fallthru
      _
    // Predicated region
    $region10: #{tpu_custom_call.1} parent=1 // pred_check
      _
    $region11: #{tpu_custom_call.1} parent=1 // pred_check_branch
      %31 = sbr.rel (0) target = $region13
    $region12: #{tpu_custom_call.1} parent=1 // pred_region
      %32 = dma.done [#allocation3], 64
    $region13: #{tpu_custom_call.1} parent=1 // pred_fallthru
      _
    // Predicated region
    $region14: #{tpu_custom_call.1} parent=1 // pred_check
      _
    $region15: #{tpu_custom_call.1} parent=1 // pred_check_branch
      %34 = sbr.rel (0) target = $region17
    $region16: #{tpu_custom_call.1} parent=1 // pred_region
      %35 = dma.done [#allocation6], 64
    $region17: #{tpu_custom_call.1} parent=1 // pred_fallthru
      _
    %p36 = scmp.eq.s32.totalorder 0, 0
    // Predicated region
    $region18: #{tpu_custom_call.1} parent=1 // pred_check
      %p37 = pneg %p36
    $region19: #{tpu_custom_call.1} parent=1 // pred_check_branch
      %39 = sbr.rel (%p37) target = $region21
    $region20: #{tpu_custom_call.1} parent=1 // pred_region
      %vm40 = vcmask 0
      %41 = vst.msk [vmem:[#allocation7] sm:$0x1] %vm40, 0.0
    $region21: #{tpu_custom_call.1} parent=1 // pred_fallthru
      _
    %v42 = vld [vmem:[#allocation2] sm:$0x7]
    %v43 = vld [vmem:[#allocation5] sm:$0x7]
    %v44 = vmul.f32 %v42, %v43
    %v45 = vmul.f32 %v42, %v42
    %v46 = vmul.f32 %v43, %v43
    %v48 = vrot.slane %v44, 1
    %v50 = vadd.f32 %v44, %v48
    %v52 = vrot.slane %v45, 1
    %v54 = vadd.f32 %v45, %v52
    %v56 = vrot.slane %v46, 1
    %v58 = vadd.f32 %v46, %v56
    %v59 = vrot.slane %v44, 2
    %v61 = vadd.f32 %v50, %v59
    %v62 = vrot.slane %v45, 2
    %v64 = vadd.f32 %v54, %v62
    %v65 = vrot.slane %v46, 2
    %v67 = vadd.f32 %v58, %v65
    %v68 = vmul.f32 %v64, %v67
    %v69 = vmax.f32 %v68, 1e-16
    %v70 = vrsqrt.pop %v69
    %v71 = vmul.f32 %v61, %v70
    %v72 = vmax.f32 %v71, -0.99999
    %v73 = vmin.f32 %v72, 0.99999
    %v74 = vand.u32 2147483647, %v73
    %v75 = vmul.f32 %v74, -0.0012624911
    %v76 = vadd.f32 %v75, 0.00667009
    %v77 = vmul.f32 %v76, %v74
    %v78 = vadd.f32 %v77, -0.017088126
    %v79 = vmul.f32 %v78, %v74
    %v80 = vadd.f32 %v79, 0.03089188
    %v81 = vmul.f32 %v80, %v74
    %v82 = vadd.f32 %v81, -0.050174303
    %v83 = vmul.f32 %v82, %v74
    %v84 = vadd.f32 %v83, 0.08897899
    %v85 = vmul.f32 %v84, %v74
    %v86 = vadd.f32 %v85, -0.2145988
    %v87 = vmul.f32 %v86, %v74
    %v88 = vadd.f32 %v87, 1.5707963
    %v89 = vsub.f32 1.0, %v74
    %v90 = vrsqrt.pop %v89
    %v91 = vmul.f32 %v89, %v90
    %vm92 = vcmp.eq.f32.partialorder %v89, inf
    %v93 = vsel %vm92, %v89, %v91
    %vm94 = vcmp.eq.f32.partialorder %v89, 0.0
    %v95 = vand.u32 %v89, 2147483648
    %v96 = vsel %vm94, %v95, %v93
    %v97 = vmul.f32 %v96, %v88
    %vm98 = vcmp.ge.f32.partialorder %v73, 0.0
    %v99 = vsub.f32 3.1415927, %v97
    %v100 = vsel %vm98, %v97, %v99
    %s101 = smul.u32 0, 128
    %v102 = vlaneseq
    %v103 = vand.u32 %v102, 127
    %v104 = vstv %s101
    %v105 = vadd.s32 %v104, %v103
    %vm106 = vcmp.lt.s32.totalorder %v105, 8
    %v107 = vsel %vm106, %v100, 0.0
    %v108 = vld [vmem:[#allocation7] sm:$0x1]
    %vm109 = vcmask 1040384
    %v110 = vsel %vm109, %v107, 0.0
    %111 = vadd.xlane.f32.xlu0 %v110
    %v112 = vpop.xlane.xlu0 %111
    %v113 = vadd.f32 %v108, %v112
    %vm114 = vcmask 0
    %115 = vst.msk [vmem:[#allocation7] sm:$0x1] %vm114, %v113
    // Predicated region
    $region22: #{tpu_custom_call.1} parent=1 // pred_check
      %p116 = pneg %p36
    $region23: #{tpu_custom_call.1} parent=1 // pred_check_branch
      %118 = sbr.rel (%p116) target = $region25
    $region24: #{tpu_custom_call.1} parent=1 // pred_region
      %v119 = vld [vmem:[#allocation7] sm:$0x1]
      %v120 = vmul.f32 %v119, 7.1619725
      %121 = vst.msk [vmem:[#allocation7] sm:$0x1] %vm114, %v120
    $region25: #{tpu_custom_call.1} parent=1 // pred_fallthru
      _
    // Predicated region
    $region26: #{tpu_custom_call.1} parent=1 // pred_check
      _
    $region27: #{tpu_custom_call.1} parent=1 // pred_check_branch
      %123 = sbr.rel (0) target = $region29
    $region28: #{tpu_custom_call.1} parent=1 // pred_region
      %s125 = ssub.s32 16, 16
      %126 = vsyncadd [#allocation4], %s125
      %s128 = sshll.u32 [#allocation7], 4
      %s129 = int_to_ptr.vmem [resolvable:$true] %s128
      %131 = dma.vmem_to_hbm [thread:$0]  %s129, 16, %s2, [#allocation4]
    $region29: #{tpu_custom_call.1} parent=1 // pred_fallthru
      _
    // Predicated region
    $region30: #{tpu_custom_call.1} parent=1 // pred_check
      _
    $region31: #{tpu_custom_call.1} parent=1 // pred_check_branch
      %133 = sbr.rel (0) target = $region33
    $region32: #{tpu_custom_call.1} parent=1 // pred_region
      %134 = dma.done [#allocation4], 16
    $region33: #{tpu_custom_call.1} parent=1 // pred_fallthru
      _
    %135 = vsyncpa [#allocation3], 1
    %136 = vsyncpa [#allocation6], 1
    %137 = vsyncpa [#allocation4], 1

</llo_original>
